<compile_context>
chip_gen: v7x
topology: tpu7x:2x2x1
jax: 0.10.0
libtpu: 0.0.40
codegen_flags: <defaults>
</compile_context>

<pallas_src>
import numpy as np
import jax
import jax.numpy as jnp
from jax.experimental import pallas as pl
from jax.experimental.pallas import tpu as pltpu


def _pos_bcast_kernel(tab_ref, o_ref):
    # tab_ref: (d_model, TILE_HW) one tile's worth of the positional pattern.
    #          It is identical for every (batch, hw-tile) grid point because the
    #          pattern repeats every W lanes and TILE_HW % W == 0 (the block
    #          index is constant, so it is fetched into VMEM only once).
    # o_ref  : (d_model, TILE_HW) output block for the current (b, t).
    # Pure lane-dense copy: replication over batch and H happens through the
    # grid's pipelined output DMAs (store-bound architectural floor).
    o_ref[...] = tab_ref[...]


def _choose_tile_hw(d_model, H, W, budget_bytes=4 << 20):
    """Pick TILE_HW = rows*W with rows | H, lane-dense (mult of 128 or full HW),
    such that the double-buffered f32 output block stays within budget."""
    HW = H * W
    if 2 * d_model * HW * 4 <= budget_bytes:
        return HW
    for rows in range(H, 0, -1):
        if H % rows:
            continue
        t = rows * W
        if t % 128 != 0:
            continue
        if 2 * d_model * t * 4 <= budget_bytes:
            return t
    return HW  # fallback: single block (may need a larger vmem limit)


def positional_encoding_2d(x, d_model):
    """Pallas equivalent of PositionalEncoding2D(d_model).forward(x)."""
    B, C, H, W = x.shape
    # Faithful to the torch module: assigning y_pos.squeeze() (shape (H,)) into
    # a (B, H, W) slice broadcasts it along the trailing W axis, which requires
    # H == W and makes every channel vary only along W.
    assert H == W, "torch module's broadcast of y_pos.squeeze() requires H == W"
    HW = H * W

    # Exact (d_model, W) sin/cos table, built once at trace time (float32, same
    # arithmetic order as the torch reference).  Channels >= 4*(d_model//4)
    # stay zero, matching the torch zeros for the tail channels.
    table = np.zeros((d_model, W), np.float32)
    wv = np.arange(W, dtype=np.float32)
    for i in range(d_model // 4):
        div = 10000.0 ** (2.0 * i / d_model)
        table[4 * i + 0] = np.sin((wv / H) * div)   # "y" sin channel (H == W)
        table[4 * i + 1] = np.cos((wv / H) * div)   # "y" cos channel
        table[4 * i + 2] = np.sin((wv / W) * div)   # "x" sin channel
        table[4 * i + 3] = np.cos((wv / W) * div)   # "x" cos channel

    tile_hw = _choose_tile_hw(d_model, H, W)
    n_tiles = HW // tile_hw
    # Pre-replicate the W-periodic pattern across the rows covered by one
    # lane-dense tile (still a tiny host constant: d_model * tile_hw floats).
    tab_tile = np.tile(table, (1, tile_hw // W))

    pos = pl.pallas_call(
        _pos_bcast_kernel,
        out_shape=jax.ShapeDtypeStruct((B, d_model, HW), jnp.float32),
        grid=(B, n_tiles),
        in_specs=[pl.BlockSpec((d_model, tile_hw), lambda b, t: (0, 0))],
        out_specs=pl.BlockSpec((None, d_model, tile_hw), lambda b, t: (b, 0, t)),
        compiler_params=pltpu.CompilerParams(
            dimension_semantics=("parallel", "parallel")),
    )(jnp.asarray(tab_tile))

    # Free metadata reshape: flattened lanes -> (H, W).
    # TODO(synk): in FFT_DETR the consumer computes `features + pos_embed`;
    # fusing that add here (block features over (b, hw-tile)) would avoid
    # materializing pos in HBM at all.
    return pos.reshape(B, d_model, H, W)


def _ref_numpy(B, d_model, H, W):
    """Direct transcription of the torch forward (numpy broadcasting == torch's)."""
    pos = np.zeros((B, d_model, H, W), np.float32)
    y = np.arange(H, dtype=np.float32) / H    # (H,) broadcasts along last axis (H == W)
    xw = np.arange(W, dtype=np.float32) / W   # (W,)
    for i in range(d_model // 4):
        div = 10000 ** (2 * i / d_model)
        pos[:, 4 * i, :, :] = np.sin(y * div)
        pos[:, 4 * i + 1, :, :] = np.cos(y * div)
        pos[:, 4 * i + 2, :, :] = np.sin(xw * div)
        pos[:, 4 * i + 3, :, :] = np.cos(xw * div)
    return pos


if __name__ == "__main__":
    d_model = 32
    B, C, H, W = 2, 4, 16, 16

    key = jax.random.PRNGKey(0)
    x = jax.random.normal(key, (B, C, H, W), dtype=jnp.float32)

    out = jax.block_until_ready(positional_encoding_2d(x, d_model))

    ref = _ref_numpy(B, d_model, H, W)
    assert out.shape == (B, d_model, H, W)
    assert out.dtype == jnp.float32
    np.testing.assert_allclose(np.asarray(out), ref, rtol=1e-5, atol=1e-5)

    print("KERNEL_OK")
</pallas_src>

<mosaic_0001>
module attributes {stable_mosaic.version = 11 : i64} {
  func.func @_pos_bcast_kernel(%arg0: i32, %arg1: i32, %arg2: memref<32x256xf32, #tpu.memory_space<vmem>>, %arg3: memref<1x32x256xf32, #tpu.memory_space<vmem>>) attributes {dimension_semantics = [#tpu.dimension_semantics<parallel>, #tpu.dimension_semantics<parallel>], iteration_bounds = array<i64: 2, 1>, scalar_prefetch = 0 : i64, scratch_operands = 0 : i64, tpu.core_type = #tpu.core_type<tc>, window_params = [{pipeline_mode = #tpu.pipeline_mode<synchronous>, transform_indices = @transform_0, window_bounds = array<i64: 32, 256>}, {transform_indices = @transform_1, window_bounds = array<i64: 1, 32, 256>}]} {
    %c0 = arith.constant 0 : index
    %c0_0 = arith.constant 0 : index
    %0 = vector.load %arg2[%c0, %c0_0] : memref<32x256xf32, #tpu.memory_space<vmem>>, vector<32x256xf32>
    %c0_1 = arith.constant 0 : index
    %c0_2 = arith.constant 0 : index
    %c0_3 = arith.constant 0 : index
    %1 = vector.load %arg3[%c0_1, %c0_2, %c0_3] : memref<1x32x256xf32, #tpu.memory_space<vmem>>, vector<1x32x256xf32>
    %2 = vector.shape_cast %1 : vector<1x32x256xf32> to vector<32x256xf32>
    %3 = vector.shape_cast %0 : vector<32x256xf32> to vector<1x32x256xf32>
    tpu.vector_store %arg3[%c0_1, %c0_2, %c0_3], %3 {strides = array<i32>} : memref<1x32x256xf32, #tpu.memory_space<vmem>>, vector<1x32x256xf32>,
    return
  }
  func.func @transform_0(%arg0: i32, %arg1: i32) -> (i32, i32) {
    %c0_i32 = arith.constant 0 : i32
    %c0_i32_0 = arith.constant 0 : i32
    %c0_i32_1 = arith.constant 0 : i32
    return %c0_i32, %c0_i32_0 : i32, i32
  }
  func.func @transform_1(%arg0: i32, %arg1: i32) -> (i32, i32, i32) {
    %c0_i32 = arith.constant 0 : i32
    %c0_i32_0 = arith.constant 0 : i32
    return %arg0, %c0_i32, %arg1 : i32, i32, i32
  }
}

</mosaic_0001>

<llo_original>
// kernel: tpu_custom_call.1
$region0: #{tpu_custom_call.1}
  #allocation0 [shape = 'u32[]', space=smem, size = 0x4, offset = 0x4, fixed_abs, tag = 'smem constant byte address 0x4 - core index']
  #allocation1 [shape = 'u32[144,128]{1,0:T(1,128)}', space=vmem, size = 0x12000, scoped, tag = 'internal scratch']
  %s0 = inlined_call_operand.hbm [shape: f32[32,256], index: 0, kind: input, shape index: {}]
  %s1 = inlined_call_operand.hbm [shape: f32[2,32,256], index: 1, kind: output, shape index: {}]
  %s2 = sld [smem:[#allocation0]]
  $region41: #{tpu_custom_call.1} parent=0
    _
  %s4 = ssub.s32 1, %s2
  %s5 = scalar_select 0, %s4, %s2
  $region1: #{tpu_custom_call.1} parent=0
    #allocation2 [shape = 'u8[32768]{0}', space=vmem, size = 0x8000, scoped, tag = 'input window, operand 0, single buffered']
    #allocation3 [shape = 's32[2]{0}', space=sflag, size = 0x8, scoped, tag = 'scoped memory for tpu_custom_call.1']
    #allocation4 [shape = 's32[2]{0}', space=sflag, size = 0x8, scoped, tag = 'scoped memory for tpu_custom_call.1']
    #allocation5 [shape = 'u8[65536]{0}', space=vmem, size = 0x10000, scoped, tag = 'output window, operand 0']
    %6 = vsyncpa [#allocation3], 0
    %7 = vsyncpa [#allocation4], 0
    %s8 = scalar_lea.sflag [#allocation4], 1
    %9 = vsyncpa %s8, 0
    loop: start=0, step=1, limit=4
    $region2: #{tpu_custom_call.1} parent=1 // loop_pre_header
      _
    $region3: #{tpu_custom_call.1} parent=1 // loop_header
      %s11 = sphi 0, %s15
      %p12 = scmp.ge.s32.totalorder %s11, 4
      %s18 = sphi 0, %s30
      %s19 = sphi 0, %s26
      %s20 = sphi 0, %s18
      %s21 = sphi 0, %s19
      %s22 = sphi 0, %s20
      %s23 = sphi 0, %s21
      %s31 = sphi 0, %s31
      %s33 = sphi 0, %s31
      %s34 = sphi 0, %s33
      %s48 = sphi 0, %s34
      %s56 = sphi 0, %s58
      %s59 = sphi 0, %s56
      %s60 = sphi 0, %s59
      %s76 = sphi 0, %s60
    $region4: #{tpu_custom_call.1} parent=1 // loop_header_branch
      %14 = sbr.rel (%p12) target = $region8
    $region5: #{tpu_custom_call.1} parent=1 // loop_body
      %s16 = ssub.s32 %s11, 1
      %s17 = ssub.s32 %s11, 2
      %s24 = sadd.s32 1, %s19
      %p25 = scmp.ge.s32.totalorder %s24, 1
      %s26 = scalar_select %p25, 0, %s24
      %s27 = sadd.s32 1, %s18
      %s28 = scalar_select %p25, %s27, %s18
      %p29 = scmp.ge.s32.totalorder %s28, 2
      %s30 = scalar_select %p29, 0, %s28
      %s32 = sadd.s32 %s31, 1
      %p35 = scmp.eq.s32.totalorder %s11, 1
      %p36 = scmp.ne.s32.totalorder %s31, %s33
      %p37 = scmp.eq.s32.totalorder %s11, 0
      %p38 = por %p36, %p37
      %p39 = scmp.ne.s32.totalorder %s31, %s33
      %p40 = scmp.eq.s32.totalorder %s16, 1
      %p41 = por %p39, %p40
      %p42 = scmp.ne.s32.totalorder %s33, %s34
      %p43 = scmp.eq.s32.totalorder %s16, 0
      %p44 = por %p42, %p43
      %p45 = scmp.ne.s32.totalorder %s33, %s34
      %p46 = scmp.eq.s32.totalorder %s17, 1
      %p47 = por %p45, %p46
      %p49 = scmp.ne.s32.totalorder %s34, %s48
      %p50 = scmp.eq.s32.totalorder %s17, 0
      %p51 = por %p49, %p50
      %s52 = ssub.s32 %s18, %s30
      %s53 = ssub.s32 %s19, %s26
      %s54 = sor.u32 %s52, %s53
      %p55 = scmp.eq.s32.totalorder %s54, 0
      %s57 = sadd.s32 %s56, 1
      %s58 = scalar_select %p55, %s56, %s57
      %p61 = pneg %p55
      %p62 = scmp.eq.s32.totalorder %s11, 1
      %p63 = por %p61, %p62
      %p64 = scmp.ne.s32.totalorder %s56, %s59
      %p65 = scmp.eq.s32.totalorder %s11, 0
      %p66 = por %p64, %p65
      %p67 = scmp.ne.s32.totalorder %s56, %s59
      %p68 = scmp.eq.s32.totalorder %s16, 1
      %p69 = por %p67, %p68
      %p70 = scmp.ne.s32.totalorder %s59, %s60
      %p71 = scmp.eq.s32.totalorder %s16, 0
      %p72 = por %p70, %p71
      %p73 = scmp.ne.s32.totalorder %s59, %s60
      %p74 = scmp.eq.s32.totalorder %s17, 1
      %p75 = por %p73, %p74
      %p77 = scmp.ne.s32.totalorder %s60, %s76
      %p78 = scmp.eq.s32.totalorder %s17, 0
      %p79 = por %p77, %p78
      %p80 = scmp.le.s32.totalorder 1, %s11
      %p81 = scmp.lt.s32.totalorder %s11, 3
      %p82 = pnand %p80, %p81
      %p83 = pneg %p82
      // Predicated region
      $region9: #{tpu_custom_call.1} parent=5 // pred_check
        _
      $region10: #{tpu_custom_call.1} parent=5 // pred_check_branch
        %85 = sbr.rel (%p82) target = $region12
      $region11: #{tpu_custom_call.1} parent=5 // pred_region
        %s86 = ssub.s32 %s11, 1
        // Predicated region
        $region13: #{tpu_custom_call.1} parent=11 // pred_check
          %p87 = pneg %p44
        $region14: #{tpu_custom_call.1} parent=11 // pred_check_branch
          %89 = sbr.rel (%p87) target = $region16
        $region15: #{tpu_custom_call.1} parent=11 // pred_region
          %s91 = ssub.s32 1024, 1024
          %92 = vsyncadd [#allocation3], %s91
          %s93 = sshll.u32 [#allocation2], 4
          %s94 = int_to_ptr.vmem [resolvable:$true] %s93
          %99 = dma.hbm_to_vmem [thread:$0]  %s0, 1024, %s94, [#allocation3], 256, 256, 16
        $region16: #{tpu_custom_call.1} parent=11 // pred_fallthru
          _
      $region12: #{tpu_custom_call.1} parent=5 // pred_fallthru
        _
      %p100 = scmp.lt.s32.totalorder %s11, 2
      // Predicated region
      $region17: #{tpu_custom_call.1} parent=5 // pred_check
        %p101 = pneg %p100
      $region18: #{tpu_custom_call.1} parent=5 // pred_check_branch
        %103 = sbr.rel (%p101) target = $region20
      $region19: #{tpu_custom_call.1} parent=5 // pred_region
        _
      $region20: #{tpu_custom_call.1} parent=5 // pred_fallthru
        _
      %p104 = scmp.le.s32.totalorder 1, %s11
      %p105 = scmp.lt.s32.totalorder %s11, 3
      %p106 = pnand %p104, %p105
      %p107 = pneg %p106
      // Predicated region
      $region21: #{tpu_custom_call.1} parent=5 // pred_check
        _
      $region22: #{tpu_custom_call.1} parent=5 // pred_check_branch
        %109 = sbr.rel (%p106) target = $region24
      $region23: #{tpu_custom_call.1} parent=5 // pred_region
        %s110 = ssub.s32 %s11, 1
        // Predicated region
        $region25: #{tpu_custom_call.1} parent=23 // pred_check
          %p111 = pneg %p44
        $region26: #{tpu_custom_call.1} parent=23 // pred_check_branch
          %113 = sbr.rel (%p111) target = $region28
        $region27: #{tpu_custom_call.1} parent=23 // pred_region
          %114 = dma.done [#allocation3], 1024
        $region28: #{tpu_custom_call.1} parent=23 // pred_fallthru
          _
        %p115 = pneg %p44
        %p116 = pneg %p41
        %p117 = pneg %p72
        %p118 = pneg %p69
        %s119 = sand.u32 %s59, 1
        %s120 = scalar_lea.sflag [#allocation4], %s119
        %s121 = sand.u32 %s59, 1
        %s122 = smul.addr %s121, 64
        %s123 = scalar_lea.vmem [#allocation5], %s122
        %s124 = smul.u32 2, %s21
        %v125 = vld [vmem:[#allocation2] sm:$0xff]
        %v126 = vld [vmem:[#allocation2 + $0x8] sm:$0xff]
        %v127 = vld [vmem:[#allocation2 + $0x10] sm:$0xff]
        %v128 = vld [vmem:[#allocation2 + $0x18] sm:$0xff]
        %v129 = vld [vmem:[#allocation2 + $0x20] sm:$0xff]
        %v130 = vld [vmem:[#allocation2 + $0x28] sm:$0xff]
        %v131 = vld [vmem:[#allocation2 + $0x30] sm:$0xff]
        %v132 = vld [vmem:[#allocation2 + $0x38] sm:$0xff]
        %133 = vst [vmem:[%s123] sm:$0xff] %v125
        %134 = vst [vmem:[%s123 + $0x8] sm:$0xff] %v126
        %135 = vst [vmem:[%s123 + $0x10] sm:$0xff] %v127
        %136 = vst [vmem:[%s123 + $0x18] sm:$0xff] %v128
        %137 = vst [vmem:[%s123 + $0x20] sm:$0xff] %v129
        %138 = vst [vmem:[%s123 + $0x28] sm:$0xff] %v130
        %139 = vst [vmem:[%s123 + $0x30] sm:$0xff] %v131
        %140 = vst [vmem:[%s123 + $0x38] sm:$0xff] %v132
        %s141 = sand.u32 %s59, 1
        %s142 = scalar_lea.sflag [#allocation4], %s141
        %s143 = sand.u32 %s59, 1
        %s144 = smul.addr %s143, 64
        %s145 = scalar_lea.vmem [#allocation5], %s144
        // Predicated region
        $region29: #{tpu_custom_call.1} parent=23 // pred_check
          %p146 = pneg %p69
        $region30: #{tpu_custom_call.1} parent=23 // pred_check_branch
          %148 = sbr.rel (%p146) target = $region32
        $region31: #{tpu_custom_call.1} parent=23 // pred_region
          %s149 = smul.u32 2, %s21
          %s151 = ssub.s32 1024, 1024
          %152 = vsyncadd %s142, %s151
          %s153 = smul.addr %s20, 8
          %s154 = sadd.s32 %s149, %s153
          %s155 = smul.addr %s154, 128
          %s156 = scalar_lea.hbm %s1, %s155
          %s157 = sshll.u32 %s145, 4
          %s158 = int_to_ptr.vmem [resolvable:$true] %s157
          %163 = dma.vmem_to_hbm [thread:$0]  %s158, 1024, %s156, %s142, 256, 256, 16
        $region32: #{tpu_custom_call.1} parent=23 // pred_fallthru
          _
      $region24: #{tpu_custom_call.1} parent=5 // pred_fallthru
        _
      %p164 = scmp.le.s32.totalorder 2, %s11
      // Predicated region
      $region33: #{tpu_custom_call.1} parent=5 // pred_check
        %p165 = pneg %p164
      $region34: #{tpu_custom_call.1} parent=5 // pred_check_branch
        %167 = sbr.rel (%p165) target = $region36
      $region35: #{tpu_custom_call.1} parent=5 // pred_region
        %s168 = ssub.s32 %s11, 2
        // Predicated region
        $region37: #{tpu_custom_call.1} parent=35 // pred_check
          %p169 = pneg %p75
        $region38: #{tpu_custom_call.1} parent=35 // pred_check_branch
          %171 = sbr.rel (%p169) target = $region40
        $region39: #{tpu_custom_call.1} parent=35 // pred_region
          %s172 = sand.u32 %s60, 1
          %s173 = scalar_lea.sflag [#allocation4], %s172
          %s174 = sand.u32 %s60, 1
          %s175 = smul.addr %s174, 64
          %s176 = scalar_lea.vmem [#allocation5], %s175
          %177 = dma.done %s173, 1024
        $region40: #{tpu_custom_call.1} parent=35 // pred_fallthru
          _
      $region36: #{tpu_custom_call.1} parent=5 // pred_fallthru
        _
    $region6: #{tpu_custom_call.1} parent=1 // loop_footer
      %s15 = sadd.s32 1, %s11
    $region7: #{tpu_custom_call.1} parent=1 // loop_footer_branch
      %10 = sbr.rel target = $region3
    $region8: #{tpu_custom_call.1} parent=1 // loop_exit
      _
    %178 = vsyncpa [#allocation3], 1
    %s179 = scalar_lea.sflag [#allocation3], 1
    %180 = vsyncpa %s179, 1
    %181 = vsyncpa [#allocation4], 1
    %s182 = scalar_lea.sflag [#allocation4], 1
    %183 = vsyncpa %s182, 1

</llo_original>
